<compile_context>
chip_gen: v5e
topology: v5e:2x2
jax: 0.10.0
libtpu: 0.0.40
codegen_flags: <defaults>
</compile_context>

<pallas_src>
import functools

import jax
import jax.numpy as jnp
from jax.experimental import pallas as pl
from jax.experimental.pallas import tpu as pltpu


def linear_kernel(x_ref, w_ref, b_ref, o_ref):
    # x_ref: (TILE_B, 256)   w_ref: (256, 1024) [pre-transposed, resident]
    # b_ref: (1, 1024) f32   o_ref: (TILE_B, 1024)
    x = x_ref[...].astype(w_ref.dtype)  # no-op for f32 weights; bf16 opt-in
    acc = jnp.dot(x, w_ref[...], preferred_element_type=jnp.float32)
    o_ref[...] = (acc + b_ref[...]).astype(o_ref.dtype)


def prepare_params(weight, bias, param_dtype=jnp.float32):
    """One-time parameter prep (model init, NOT per call).

    weight: [1024, 256] (PyTorch nn.Linear layout), bias: [1024].
    Returns (w_t [256, 1024] in param_dtype, bias2d [1, 1024] f32).
    """
    w_t = jnp.asarray(weight).T.astype(param_dtype)
    b2d = jnp.asarray(bias).reshape(1, -1).astype(jnp.float32)
    return w_t, b2d


def _mapping_forward_impl(audio, w_t, b2d):
    """audio: [B, 256]; w_t: [256, 1024] (pre-transposed); b2d: [1, 1024]."""
    B, D_in = audio.shape
    D_out = w_t.shape[1]

    # Batch tile: full-extent block for small B (no (8,128) constraint when the
    # block equals the array), 512-row tiles otherwise (512 % 8 == 0).
    TILE_B = B if B <= 512 else 512
    n_tiles = pl.cdiv(B, TILE_B)
    B_pad = n_tiles * TILE_B
    if B_pad != B:
        audio = jnp.pad(audio, ((0, B_pad - B), (0, 0)))

    flops = 2 * B_pad * D_in * D_out
    bytes_accessed = (
        B_pad * D_in * audio.dtype.itemsize
        + w_t.size * w_t.dtype.itemsize
        + b2d.size * b2d.dtype.itemsize
        + B_pad * D_out * audio.dtype.itemsize
    )

    out = pl.pallas_call(
        linear_kernel,
        out_shape=jax.ShapeDtypeStruct((B_pad, D_out), audio.dtype),
        grid_spec=pl.GridSpec(
            grid=(n_tiles,),
            in_specs=[
                pl.BlockSpec((TILE_B, D_in), lambda i: (i, 0)),   # streamed
                pl.BlockSpec((D_in, D_out), lambda i: (0, 0)),    # resident
                pl.BlockSpec((1, D_out), lambda i: (0, 0)),       # resident
            ],
            out_specs=pl.BlockSpec((TILE_B, D_out), lambda i: (i, 0)),
        ),
        compiler_params=pltpu.CompilerParams(
            dimension_semantics=("parallel",),
        ),
        cost_estimate=pl.CostEstimate(
            flops=flops, transcendentals=0, bytes_accessed=bytes_accessed
        ),
    )(audio, w_t, b2d)

    if B_pad != B:
        out = out[:B]
    return out


mapping_forward = jax.jit(_mapping_forward_impl)


if __name__ == "__main__":
    key = jax.random.PRNGKey(0)
    k_x, k_w, k_b = jax.random.split(key, 3)

    B, D_in, D_out = 8, 256, 1024
    audio = jax.random.normal(k_x, (B, D_in), dtype=jnp.float32)
    # Deterministic init mimicking nn.Linear uniform(-1/sqrt(in), 1/sqrt(in))
    bound = 1.0 / (D_in ** 0.5)
    weight = jax.random.uniform(
        k_w, (D_out, D_in), minval=-bound, maxval=bound, dtype=jnp.float32
    )
    bias = jax.random.uniform(
        k_b, (D_out,), minval=-bound, maxval=bound, dtype=jnp.float32
    )

    # One-time parameter preparation (transpose happens here, never per call).
    # Default f32 storage = exact PyTorch nn.Linear semantics.
    w_t, b2d = prepare_params(weight, bias, param_dtype=jnp.float32)

    out = mapping_forward(audio, w_t, b2d)
    out = jax.block_until_ready(out)

    # Reference: full-f32 PyTorch-equivalent forward (no ReLU, matching forward()).
    ref_f32 = audio @ weight.T + bias

    assert out.shape == (B, D_out)
    assert out.dtype == audio.dtype
    assert jnp.allclose(out, ref_f32, atol=1e-3, rtol=1e-3)

    # Also exercise the batch-tiled path (B > TILE_B, non-multiple) once.
    big_B = 1030
    big_audio = jax.random.normal(jax.random.PRNGKey(1), (big_B, D_in), jnp.float32)
    big_out = jax.block_until_ready(mapping_forward(big_audio, w_t, b2d))
    big_ref = big_audio @ weight.T + bias
    assert big_out.shape == (big_B, D_out)
    assert jnp.allclose(big_out, big_ref, atol=1e-3, rtol=1e-3)

    print("KERNEL_OK")
</pallas_src>

<mosaic_0001>
module attributes {stable_mosaic.version = 11 : i64} {
  func.func @linear_kernel(%arg0: i32, %arg1: memref<8x256xf32, #tpu.memory_space<vmem>>, %arg2: memref<256x1024xf32, #tpu.memory_space<vmem>>, %arg3: memref<1x1024xf32, #tpu.memory_space<vmem>>, %arg4: memref<8x1024xf32, #tpu.memory_space<vmem>>) attributes {dimension_semantics = [#tpu.dimension_semantics<parallel>], iteration_bounds = array<i64: 1>, scalar_prefetch = 0 : i64, scratch_operands = 0 : i64, tpu.core_type = #tpu.core_type<tc>, window_params = [{transform_indices = @transform_0, window_bounds = array<i64: 8, 256>}, {pipeline_mode = #tpu.pipeline_mode<synchronous>, transform_indices = @transform_1, window_bounds = array<i64: 256, 1024>}, {pipeline_mode = #tpu.pipeline_mode<synchronous>, transform_indices = @transform_2, window_bounds = array<i64: 1, 1024>}, {transform_indices = @transform_3, window_bounds = array<i64: 8, 1024>}]} {
    %c0 = arith.constant 0 : index
    %c0_0 = arith.constant 0 : index
    %0 = vector.load %arg1[%c0, %c0_0] : memref<8x256xf32, #tpu.memory_space<vmem>>, vector<8x256xf32>
    %c0_1 = arith.constant 0 : index
    %c0_2 = arith.constant 0 : index
    %1 = vector.load %arg2[%c0_1, %c0_2] : memref<256x1024xf32, #tpu.memory_space<vmem>>, vector<256x1024xf32>
    %cst = arith.constant dense<0.000000e+00> : vector<8x1024xf32>
    %2 = tpu.matmul %0, %1, %cst {dimension_numbers = #tpu.dot_dimension_numbers<[1], [0], [0], [1], [0, 0, 1, 1], [], []>} : vector<8x256xf32>, vector<256x1024xf32>, vector<8x1024xf32> -> vector<8x1024xf32>
    %c0_3 = arith.constant 0 : index
    %c0_4 = arith.constant 0 : index
    %3 = vector.load %arg3[%c0_3, %c0_4] : memref<1x1024xf32, #tpu.memory_space<vmem>>, vector<1x1024xf32>
    %4 = vector.broadcast %3 : vector<1x1024xf32> to vector<8x1024xf32>
    %5 = arith.addf %2, %4 : vector<8x1024xf32>
    %c0_5 = arith.constant 0 : index
    %c0_6 = arith.constant 0 : index
    %6 = vector.load %arg4[%c0_5, %c0_6] : memref<8x1024xf32, #tpu.memory_space<vmem>>, vector<8x1024xf32>
    tpu.vector_store %arg4[%c0_5, %c0_6], %5 {strides = array<i32>} : memref<8x1024xf32, #tpu.memory_space<vmem>>, vector<8x1024xf32>,
    return
  }
  func.func @transform_0(%arg0: i32) -> (i32, i32) {
    %c0_i32 = arith.constant 0 : i32
    %c0_i32_0 = arith.constant 0 : i32
    return %arg0, %c0_i32 : i32, i32
  }
  func.func @transform_1(%arg0: i32) -> (i32, i32) {
    %c0_i32 = arith.constant 0 : i32
    %c0_i32_0 = arith.constant 0 : i32
    %c0_i32_1 = arith.constant 0 : i32
    return %c0_i32, %c0_i32_0 : i32, i32
  }
  func.func @transform_2(%arg0: i32) -> (i32, i32) {
    %c0_i32 = arith.constant 0 : i32
    %c0_i32_0 = arith.constant 0 : i32
    %c0_i32_1 = arith.constant 0 : i32
    return %c0_i32, %c0_i32_0 : i32, i32
  }
  func.func @transform_3(%arg0: i32) -> (i32, i32) {
    %c0_i32 = arith.constant 0 : i32
    %c0_i32_0 = arith.constant 0 : i32
    return %arg0, %c0_i32 : i32, i32
  }
}

</mosaic_0001>

<llo_original>
// kernel: _mapping_forward_impl.1
$region0: #{_mapping_forward_impl.1}
  #allocation0 [shape = 'u32[]', space=smem, size = 0x4, offset = 0x4, fixed_abs, tag = 'smem constant byte address 0x4 - core index']
  #allocation1 [shape = 'u32[72,128]{1,0:T(1,128)}', space=vmem, size = 0x9000, scoped, tag = 'internal scratch']
  %s0 = inlined_call_operand.hbm [shape: f32[8,256], index: 0, kind: input, shape index: {}]
  %s1 = inlined_call_operand.hbm [shape: f32[256,1024], index: 1, kind: input, shape index: {}]
  %s2 = inlined_call_operand.hbm [shape: f32[1,1024], index: 2, kind: input, shape index: {}]
  %s3 = inlined_call_operand.hbm [shape: f32[8,1024], index: 3, kind: output, shape index: {}]
  %s4 = sld [smem:[#allocation0]]
  $region34: #{_mapping_forward_impl.1} parent=0
    _
  %s6 = ssub.s32 1, %s4
  %s7 = scalar_select 0, %s6, %s4
  $region1: #{_mapping_forward_impl.1} parent=0
    #allocation2 [shape = 'u8[8192]{0}', space=vmem, size = 0x2000, scoped, tag = 'input window, operand 0, single buffered']
    #allocation3 [shape = 's32[1]{0}', space=sflag, size = 0x4, scoped, tag = 'scoped memory for _mapping_forward_impl.1']
    #allocation4 [shape = 's32[1]{0}', space=sflag, size = 0x4, scoped, tag = 'scoped memory for _mapping_forward_impl.1']
    #allocation5 [shape = 'u8[1048576]{0}', space=vmem, size = 0x100000, scoped, tag = 'input window, operand 1, single buffered']
    #allocation6 [shape = 's32[1]{0}', space=sflag, size = 0x4, scoped, tag = 'scoped memory for _mapping_forward_impl.1']
    #allocation7 [shape = 'u8[4096]{0}', space=vmem, size = 0x1000, scoped, tag = 'input window, operand 2, single buffered']
    #allocation8 [shape = 'u8[32768]{0}', space=vmem, size = 0x8000, scoped, tag = 'output window, operand 0, single buffered']
    %8 = vsyncpa [#allocation3], 0
    %9 = vsyncpa [#allocation6], 0
    %10 = vsyncpa [#allocation4], 0
    // Predicated region
    $region2: #{_mapping_forward_impl.1} parent=1 // pred_check
      _
    $region3: #{_mapping_forward_impl.1} parent=1 // pred_check_branch
      %12 = sbr.rel (0) target = $region5
    $region4: #{_mapping_forward_impl.1} parent=1 // pred_region
      %14 = vsyncadd [#allocation3], 0
      %s16 = sshll.u32 %s0, 4
      %s17 = int_to_ptr.hbm [resolvable:$true] %s16
      %s18 = sshll.u32 [#allocation2], 4
      %s19 = int_to_ptr.vmem [resolvable:$true] %s18
      %21 = dma.hbm_to_vmem [thread:$0]  %s17, 256, %s19, [#allocation3]
    $region5: #{_mapping_forward_impl.1} parent=1 // pred_fallthru
      _
    // Predicated region
    $region6: #{_mapping_forward_impl.1} parent=1 // pred_check
      _
    $region7: #{_mapping_forward_impl.1} parent=1 // pred_check_branch
      %23 = sbr.rel (0) target = $region9
    $region8: #{_mapping_forward_impl.1} parent=1 // pred_region
      %25 = vsyncadd [#allocation6], 0
      %s26 = sshll.u32 %s1, 4
      %s27 = int_to_ptr.hbm [resolvable:$true] %s26
      %s28 = sshll.u32 [#allocation5], 4
      %s29 = int_to_ptr.vmem [resolvable:$true] %s28
      %34 = dma.hbm_to_vmem [thread:$0]  %s27, 32768, %s29, [#allocation6], 1024, 1024, 64
    $region9: #{_mapping_forward_impl.1} parent=1 // pred_fallthru
      _
    // Predicated region
    $region10: #{_mapping_forward_impl.1} parent=1 // pred_check
      _
    $region11: #{_mapping_forward_impl.1} parent=1 // pred_check_branch
      %36 = sbr.rel (0) target = $region13
    $region12: #{_mapping_forward_impl.1} parent=1 // pred_region
      %38 = vsyncadd [#allocation6], 0
      %s40 = sshll.u32 %s2, 4
      %s41 = int_to_ptr.hbm [resolvable:$true] %s40
      %s42 = sshll.u32 [#allocation7], 4
      %s43 = int_to_ptr.vmem [resolvable:$true] %s42
      %45 = dma.hbm_to_vmem [thread:$0]  %s41, 128, %s43, [#allocation6]
    $region13: #{_mapping_forward_impl.1} parent=1 // pred_fallthru
      _
    // Predicated region
    $region14: #{_mapping_forward_impl.1} parent=1 // pred_check
      _
    $region15: #{_mapping_forward_impl.1} parent=1 // pred_check_branch
      %47 = sbr.rel (0) target = $region17
    $region16: #{_mapping_forward_impl.1} parent=1 // pred_region
      %49 = dma.done [#allocation3], 256
    $region17: #{_mapping_forward_impl.1} parent=1 // pred_fallthru
      _
    // Predicated region
    $region18: #{_mapping_forward_impl.1} parent=1 // pred_check
      _
    $region19: #{_mapping_forward_impl.1} parent=1 // pred_check_branch
      %51 = sbr.rel (0) target = $region21
    $region20: #{_mapping_forward_impl.1} parent=1 // pred_region
      %53 = dma.done [#allocation6], 32768
    $region21: #{_mapping_forward_impl.1} parent=1 // pred_fallthru
      _
    // Predicated region
    $region22: #{_mapping_forward_impl.1} parent=1 // pred_check
      _
    $region23: #{_mapping_forward_impl.1} parent=1 // pred_check_branch
      %55 = sbr.rel (0) target = $region25
    $region24: #{_mapping_forward_impl.1} parent=1 // pred_region
      %57 = dma.done [#allocation6], 128
    $region25: #{_mapping_forward_impl.1} parent=1 // pred_fallthru
      _
    %v58 = vld [vmem:[#allocation2] sm:$0xff]
    %v59 = vld [vmem:[#allocation2 + $0x8] sm:$0xff]
    %v60 = vld [vmem:[#allocation5] sm:$0xff]
    %v61 = vld [vmem:[#allocation5 + $0x8] sm:$0xff]
    %v62 = vld [vmem:[#allocation5 + $0x10] sm:$0xff]
    %v63 = vld [vmem:[#allocation5 + $0x18] sm:$0xff]
    %v64 = vld [vmem:[#allocation5 + $0x20] sm:$0xff]
    %v65 = vld [vmem:[#allocation5 + $0x28] sm:$0xff]
    %v66 = vld [vmem:[#allocation5 + $0x30] sm:$0xff]
    %v67 = vld [vmem:[#allocation5 + $0x38] sm:$0xff]
    %v68 = vld [vmem:[#allocation5 + $0x40] sm:$0xff]
    %v69 = vld [vmem:[#allocation5 + $0x48] sm:$0xff]
    %v70 = vld [vmem:[#allocation5 + $0x50] sm:$0xff]
    %v71 = vld [vmem:[#allocation5 + $0x58] sm:$0xff]
    %v72 = vld [vmem:[#allocation5 + $0x60] sm:$0xff]
    %v73 = vld [vmem:[#allocation5 + $0x68] sm:$0xff]
    %v74 = vld [vmem:[#allocation5 + $0x70] sm:$0xff]
    %v75 = vld [vmem:[#allocation5 + $0x78] sm:$0xff]
    %v76 = vld [vmem:[#allocation5 + $0x80] sm:$0xff]
    %v77 = vld [vmem:[#allocation5 + $0x88] sm:$0xff]
    %v78 = vld [vmem:[#allocation5 + $0x90] sm:$0xff]
    %v79 = vld [vmem:[#allocation5 + $0x98] sm:$0xff]
    %v80 = vld [vmem:[#allocation5 + $0xa0] sm:$0xff]
    %v81 = vld [vmem:[#allocation5 + $0xa8] sm:$0xff]
    %v82 = vld [vmem:[#allocation5 + $0xb0] sm:$0xff]
    %v83 = vld [vmem:[#allocation5 + $0xb8] sm:$0xff]
    %v84 = vld [vmem:[#allocation5 + $0xc0] sm:$0xff]
    %v85 = vld [vmem:[#allocation5 + $0xc8] sm:$0xff]
    %v86 = vld [vmem:[#allocation5 + $0xd0] sm:$0xff]
    %v87 = vld [vmem:[#allocation5 + $0xd8] sm:$0xff]
    %v88 = vld [vmem:[#allocation5 + $0xe0] sm:$0xff]
    %v89 = vld [vmem:[#allocation5 + $0xe8] sm:$0xff]
    %v90 = vld [vmem:[#allocation5 + $0xf0] sm:$0xff]
    %v91 = vld [vmem:[#allocation5 + $0xf8] sm:$0xff]
    %v92 = vld [vmem:[#allocation5 + $0x100] sm:$0xff]
    %v93 = vld [vmem:[#allocation5 + $0x108] sm:$0xff]
    %v94 = vld [vmem:[#allocation5 + $0x110] sm:$0xff]
    %v95 = vld [vmem:[#allocation5 + $0x118] sm:$0xff]
    %v96 = vld [vmem:[#allocation5 + $0x120] sm:$0xff]
    %v97 = vld [vmem:[#allocation5 + $0x128] sm:$0xff]
    %v98 = vld [vmem:[#allocation5 + $0x130] sm:$0xff]
    %v99 = vld [vmem:[#allocation5 + $0x138] sm:$0xff]
    %v100 = vld [vmem:[#allocation5 + $0x140] sm:$0xff]
    %v101 = vld [vmem:[#allocation5 + $0x148] sm:$0xff]
    %v102 = vld [vmem:[#allocation5 + $0x150] sm:$0xff]
    %v103 = vld [vmem:[#allocation5 + $0x158] sm:$0xff]
    %v104 = vld [vmem:[#allocation5 + $0x160] sm:$0xff]
    %v105 = vld [vmem:[#allocation5 + $0x168] sm:$0xff]
    %v106 = vld [vmem:[#allocation5 + $0x170] sm:$0xff]
    %v107 = vld [vmem:[#allocation5 + $0x178] sm:$0xff]
    %v108 = vld [vmem:[#allocation5 + $0x180] sm:$0xff]
    %v109 = vld [vmem:[#allocation5 + $0x188] sm:$0xff]
    %v110 = vld [vmem:[#allocation5 + $0x190] sm:$0xff]
    %v111 = vld [vmem:[#allocation5 + $0x198] sm:$0xff]
    %v112 = vld [vmem:[#allocation5 + $0x1a0] sm:$0xff]
    %v113 = vld [vmem:[#allocation5 + $0x1a8] sm:$0xff]
    %v114 = vld [vmem:[#allocation5 + $0x1b0] sm:$0xff]
    %v115 = vld [vmem:[#allocation5 + $0x1b8] sm:$0xff]
    %v116 = vld [vmem:[#allocation5 + $0x1c0] sm:$0xff]
    %v117 = vld [vmem:[#allocation5 + $0x1c8] sm:$0xff]
    %v118 = vld [vmem:[#allocation5 + $0x1d0] sm:$0xff]
    %v119 = vld [vmem:[#allocation5 + $0x1d8] sm:$0xff]
    %v120 = vld [vmem:[#allocation5 + $0x1e0] sm:$0xff]
    %v121 = vld [vmem:[#allocation5 + $0x1e8] sm:$0xff]
    %v122 = vld [vmem:[#allocation5 + $0x1f0] sm:$0xff]
    %v123 = vld [vmem:[#allocation5 + $0x1f8] sm:$0xff]
    %v124 = vld [vmem:[#allocation5 + $0x200] sm:$0xff]
    %v125 = vld [vmem:[#allocation5 + $0x208] sm:$0xff]
    %v126 = vld [vmem:[#allocation5 + $0x210] sm:$0xff]
    %v127 = vld [vmem:[#allocation5 + $0x218] sm:$0xff]
    %v128 = vld [vmem:[#allocation5 + $0x220] sm:$0xff]
    %v129 = vld [vmem:[#allocation5 + $0x228] sm:$0xff]
    %v130 = vld [vmem:[#allocation5 + $0x230] sm:$0xff]
    %v131 = vld [vmem:[#allocation5 + $0x238] sm:$0xff]
    %v132 = vld [vmem:[#allocation5 + $0x240] sm:$0xff]
    %v133 = vld [vmem:[#allocation5 + $0x248] sm:$0xff]
    %v134 = vld [vmem:[#allocation5 + $0x250] sm:$0xff]
    %v135 = vld [vmem:[#allocation5 + $0x258] sm:$0xff]
    %v136 = vld [vmem:[#allocation5 + $0x260] sm:$0xff]
    %v137 = vld [vmem:[#allocation5 + $0x268] sm:$0xff]
    %v138 = vld [vmem:[#allocation5 + $0x270] sm:$0xff]
    %v139 = vld [vmem:[#allocation5 + $0x278] sm:$0xff]
    %v140 = vld [vmem:[#allocation5 + $0x280] sm:$0xff]
    %v141 = vld [vmem:[#allocation5 + $0x288] sm:$0xff]
    %v142 = vld [vmem:[#allocation5 + $0x290] sm:$0xff]
    %v143 = vld [vmem:[#allocation5 + $0x298] sm:$0xff]
    %v144 = vld [vmem:[#allocation5 + $0x2a0] sm:$0xff]
    %v145 = vld [vmem:[#allocation5 + $0x2a8] sm:$0xff]
    %v146 = vld [vmem:[#allocation5 + $0x2b0] sm:$0xff]
    %v147 = vld [vmem:[#allocation5 + $0x2b8] sm:$0xff]
    %v148 = vld [vmem:[#allocation5 + $0x2c0] sm:$0xff]
    %v149 = vld [vmem:[#allocation5 + $0x2c8] sm:$0xff]
    %v150 = vld [vmem:[#allocation5 + $0x2d0] sm:$0xff]
    %v151 = vld [vmem:[#allocation5 + $0x2d8] sm:$0xff]
    %v152 = vld [vmem:[#allocation5 + $0x2e0] sm:$0xff]
    %v153 = vld [vmem:[#allocation5 + $0x2e8] sm:$0xff]
    %v154 = vld [vmem:[#allocation5 + $0x2f0] sm:$0xff]
    %v155 = vld [vmem:[#allocation5 + $0x2f8] sm:$0xff]
    %v156 = vld [vmem:[#allocation5 + $0x300] sm:$0xff]
    %v157 = vld [vmem:[#allocation5 + $0x308] sm:$0xff]
    %v158 = vld [vmem:[#allocation5 + $0x310] sm:$0xff]
    %v159 = vld [vmem:[#allocation5 + $0x318] sm:$0xff]
    %v160 = vld [vmem:[#allocation5 + $0x320] sm:$0xff]
    %v161 = vld [vmem:[#allocation5 + $0x328] sm:$0xff]
    %v162 = vld [vmem:[#allocation5 + $0x330] sm:$0xff]
    %v163 = vld [vmem:[#allocation5 + $0x338] sm:$0xff]
    %v164 = vld [vmem:[#allocation5 + $0x340] sm:$0xff]
    %v165 = vld [vmem:[#allocation5 + $0x348] sm:$0xff]
    %v166 = vld [vmem:[#allocation5 + $0x350] sm:$0xff]
    %v167 = vld [vmem:[#allocation5 + $0x358] sm:$0xff]
    %v168 = vld [vmem:[#allocation5 + $0x360] sm:$0xff]
    %v169 = vld [vmem:[#allocation5 + $0x368] sm:$0xff]
    %v170 = vld [vmem:[#allocation5 + $0x370] sm:$0xff]
    %v171 = vld [vmem:[#allocation5 + $0x378] sm:$0xff]
    %v172 = vld [vmem:[#allocation5 + $0x380] sm:$0xff]
    %v173 = vld [vmem:[#allocation5 + $0x388] sm:$0xff]
    %v174 = vld [vmem:[#allocation5 + $0x390] sm:$0xff]
    %v175 = vld [vmem:[#allocation5 + $0x398] sm:$0xff]
    %v176 = vld [vmem:[#allocation5 + $0x3a0] sm:$0xff]
    %v177 = vld [vmem:[#allocation5 + $0x3a8] sm:$0xff]
    %v178 = vld [vmem:[#allocation5 + $0x3b0] sm:$0xff]
    %v179 = vld [vmem:[#allocation5 + $0x3b8] sm:$0xff]
    %v180 = vld [vmem:[#allocation5 + $0x3c0] sm:$0xff]
    %v181 = vld [vmem:[#allocation5 + $0x3c8] sm:$0xff]
    %v182 = vld [vmem:[#allocation5 + $0x3d0] sm:$0xff]
    %v183 = vld [vmem:[#allocation5 + $0x3d8] sm:$0xff]
    %v184 = vld [vmem:[#allocation5 + $0x3e0] sm:$0xff]
    %v185 = vld [vmem:[#allocation5 + $0x3e8] sm:$0xff]
    %v186 = vld [vmem:[#allocation5 + $0x3f0] sm:$0xff]
    %v187 = vld [vmem:[#allocation5 + $0x3f8] sm:$0xff]
    %v188 = vld [vmem:[#allocation5 + $0x400] sm:$0xff]
    %v189 = vld [vmem:[#allocation5 + $0x408] sm:$0xff]
    %v190 = vld [vmem:[#allocation5 + $0x410] sm:$0xff]
    %v191 = vld [vmem:[#allocation5 + $0x418] sm:$0xff]
    %v192 = vld [vmem:[#allocation5 + $0x420] sm:$0xff]
    %v193 = vld [vmem:[#allocation5 + $0x428] sm:$0xff]
    %v194 = vld [vmem:[#allocation5 + $0x430] sm:$0xff]
    %v195 = vld [vmem:[#allocation5 + $0x438] sm:$0xff]
    %v196 = vld [vmem:[#allocation5 + $0x440] sm:$0xff]
    %v197 = vld [vmem:[#allocation5 + $0x448] sm:$0xff]
    %v198 = vld [vmem:[#allocation5 + $0x450] sm:$0xff]
    %v199 = vld [vmem:[#allocation5 + $0x458] sm:$0xff]
    %v200 = vld [vmem:[#allocation5 + $0x460] sm:$0xff]
    %v201 = vld [vmem:[#allocation5 + $0x468] sm:$0xff]
    %v202 = vld [vmem:[#allocation5 + $0x470] sm:$0xff]
    %v203 = vld [vmem:[#allocation5 + $0x478] sm:$0xff]
    %v204 = vld [vmem:[#allocation5 + $0x480] sm:$0xff]
    %v205 = vld [vmem:[#allocation5 + $0x488] sm:$0xff]
    %v206 = vld [vmem:[#allocation5 + $0x490] sm:$0xff]
    %v207 = vld [vmem:[#allocation5 + $0x498] sm:$0xff]
    %v208 = vld [vmem:[#allocation5 + $0x4a0] sm:$0xff]
    %v209 = vld [vmem:[#allocation5 + $0x4a8] sm:$0xff]
    %v210 = vld [vmem:[#allocation5 + $0x4b0] sm:$0xff]
    %v211 = vld [vmem:[#allocation5 + $0x4b8] sm:$0xff]
    %v212 = vld [vmem:[#allocation5 + $0x4c0] sm:$0xff]
    %v213 = vld [vmem:[#allocation5 + $0x4c8] sm:$0xff]
    %v214 = vld [vmem:[#allocation5 + $0x4d0] sm:$0xff]
    %v215 = vld [vmem:[#allocation5 + $0x4d8] sm:$0xff]
    %v216 = vld [vmem:[#allocation5 + $0x4e0] sm:$0xff]
    %v217 = vld [vmem:[#allocation5 + $0x4e8] sm:$0xff]
    %v218 = vld [vmem:[#allocation5 + $0x4f0] sm:$0xff]
    %v219 = vld [vmem:[#allocation5 + $0x4f8] sm:$0xff]
    %v220 = vld [vmem:[#allocation5 + $0x500] sm:$0xff]
    %v221 = vld [vmem:[#allocation5 + $0x508] sm:$0xff]
    %v222 = vld [vmem:[#allocation5 + $0x510] sm:$0xff]
    %v223 = vld [vmem:[#allocation5 + $0x518] sm:$0xff]
    %v224 = vld [vmem:[#allocation5 + $0x520] sm:$0xff]
    %v225 = vld [vmem:[#allocation5 + $0x528] sm:$0xff]
    %v226 = vld [vmem:[#allocation5 + $0x530] sm:$0xff]
    %v227 = vld [vmem:[#allocation5 + $0x538] sm:$0xff]
    %v228 = vld [vmem:[#allocation5 + $0x540] sm:$0xff]
    %v229 = vld [vmem:[#allocation5 + $0x548] sm:$0xff]
    %v230 = vld [vmem:[#allocation5 + $0x550] sm:$0xff]
    %v231 = vld [vmem:[#allocation5 + $0x558] sm:$0xff]
    %v232 = vld [vmem:[#allocation5 + $0x560] sm:$0xff]
    %v233 = vld [vmem:[#allocation5 + $0x568] sm:$0xff]
    %v234 = vld [vmem:[#allocation5 + $0x570] sm:$0xff]
    %v235 = vld [vmem:[#allocation5 + $0x578] sm:$0xff]
    %v236 = vld [vmem:[#allocation5 + $0x580] sm:$0xff]
    %v237 = vld [vmem:[#allocation5 + $0x588] sm:$0xff]
    %v238 = vld [vmem:[#allocation5 + $0x590] sm:$0xff]
    %v239 = vld [vmem:[#allocation5 + $0x598] sm:$0xff]
    %v240 = vld [vmem:[#allocation5 + $0x5a0] sm:$0xff]
    %v241 = vld [vmem:[#allocation5 + $0x5a8] sm:$0xff]
    %v242 = vld [vmem:[#allocation5 + $0x5b0] sm:$0xff]
    %v243 = vld [vmem:[#allocation5 + $0x5b8] sm:$0xff]
    %v244 = vld [vmem:[#allocation5 + $0x5c0] sm:$0xff]
    %v245 = vld [vmem:[#allocation5 + $0x5c8] sm:$0xff]
    %v246 = vld [vmem:[#allocation5 + $0x5d0] sm:$0xff]
    %v247 = vld [vmem:[#allocation5 + $0x5d8] sm:$0xff]
    %v248 = vld [vmem:[#allocation5 + $0x5e0] sm:$0xff]
    %v249 = vld [vmem:[#allocation5 + $0x5e8] sm:$0xff]
    %v250 = vld [vmem:[#allocation5 + $0x5f0] sm:$0xff]
    %v251 = vld [vmem:[#allocation5 + $0x5f8] sm:$0xff]
    %v252 = vld [vmem:[#allocation5 + $0x600] sm:$0xff]
    %v253 = vld [vmem:[#allocation5 + $0x608] sm:$0xff]
    %v254 = vld [vmem:[#allocation5 + $0x610] sm:$0xff]
    %v255 = vld [vmem:[#allocation5 + $0x618] sm:$0xff]
    %v256 = vld [vmem:[#allocation5 + $0x620] sm:$0xff]
    %v257 = vld [vmem:[#allocation5 + $0x628] sm:$0xff]
    %v258 = vld [vmem:[#allocation5 + $0x630] sm:$0xff]
    %v259 = vld [vmem:[#allocation5 + $0x638] sm:$0xff]
    %v260 = vld [vmem:[#allocation5 + $0x640] sm:$0xff]
    %v261 = vld [vmem:[#allocation5 + $0x648] sm:$0xff]
    %v262 = vld [vmem:[#allocation5 + $0x650] sm:$0xff]
    %v263 = vld [vmem:[#allocation5 + $0x658] sm:$0xff]
    %v264 = vld [vmem:[#allocation5 + $0x660] sm:$0xff]
    %v265 = vld [vmem:[#allocation5 + $0x668] sm:$0xff]
    %v266 = vld [vmem:[#allocation5 + $0x670] sm:$0xff]
    %v267 = vld [vmem:[#allocation5 + $0x678] sm:$0xff]
    %v268 = vld [vmem:[#allocation5 + $0x680] sm:$0xff]
    %v269 = vld [vmem:[#allocation5 + $0x688] sm:$0xff]
    %v270 = vld [vmem:[#allocation5 + $0x690] sm:$0xff]
    %v271 = vld [vmem:[#allocation5 + $0x698] sm:$0xff]
    %v272 = vld [vmem:[#allocation5 + $0x6a0] sm:$0xff]
    %v273 = vld [vmem:[#allocation5 + $0x6a8] sm:$0xff]
    %v274 = vld [vmem:[#allocation5 + $0x6b0] sm:$0xff]
    %v275 = vld [vmem:[#allocation5 + $0x6b8] sm:$0xff]
    %v276 = vld [vmem:[#allocation5 + $0x6c0] sm:$0xff]
    %v277 = vld [vmem:[#allocation5 + $0x6c8] sm:$0xff]
    %v278 = vld [vmem:[#allocation5 + $0x6d0] sm:$0xff]
    %v279 = vld [vmem:[#allocation5 + $0x6d8] sm:$0xff]
    %v280 = vld [vmem:[#allocation5 + $0x6e0] sm:$0xff]
    %v281 = vld [vmem:[#allocation5 + $0x6e8] sm:$0xff]
    %v282 = vld [vmem:[#allocation5 + $0x6f0] sm:$0xff]
    %v283 = vld [vmem:[#allocation5 + $0x6f8] sm:$0xff]
    %v284 = vld [vmem:[#allocation5 + $0x700] sm:$0xff]
    %v285 = vld [vmem:[#allocation5 + $0x708] sm:$0xff]
    %v286 = vld [vmem:[#allocation5 + $0x710] sm:$0xff]
    %v287 = vld [vmem:[#allocation5 + $0x718] sm:$0xff]
    %v288 = vld [vmem:[#allocation5 + $0x720] sm:$0xff]
    %v289 = vld [vmem:[#allocation5 + $0x728] sm:$0xff]
    %v290 = vld [vmem:[#allocation5 + $0x730] sm:$0xff]
    %v291 = vld [vmem:[#allocation5 + $0x738] sm:$0xff]
    %v292 = vld [vmem:[#allocation5 + $0x740] sm:$0xff]
    %v293 = vld [vmem:[#allocation5 + $0x748] sm:$0xff]
    %v294 = vld [vmem:[#allocation5 + $0x750] sm:$0xff]
    %v295 = vld [vmem:[#allocation5 + $0x758] sm:$0xff]
    %v296 = vld [vmem:[#allocation5 + $0x760] sm:$0xff]
    %v297 = vld [vmem:[#allocation5 + $0x768] sm:$0xff]
    %v298 = vld [vmem:[#allocation5 + $0x770] sm:$0xff]
    %v299 = vld [vmem:[#allocation5 + $0x778] sm:$0xff]
    %v300 = vld [vmem:[#allocation5 + $0x780] sm:$0xff]
    %v301 = vld [vmem:[#allocation5 + $0x788] sm:$0xff]
    %v302 = vld [vmem:[#allocation5 + $0x790] sm:$0xff]
    %v303 = vld [vmem:[#allocation5 + $0x798] sm:$0xff]
    %v304 = vld [vmem:[#allocation5 + $0x7a0] sm:$0xff]
    %v305 = vld [vmem:[#allocation5 + $0x7a8] sm:$0xff]
    %v306 = vld [vmem:[#allocation5 + $0x7b0] sm:$0xff]
    %v307 = vld [vmem:[#allocation5 + $0x7b8] sm:$0xff]
    %v308 = vld [vmem:[#allocation5 + $0x7c0] sm:$0xff]
    %v309 = vld [vmem:[#allocation5 + $0x7c8] sm:$0xff]
    %v310 = vld [vmem:[#allocation5 + $0x7d0] sm:$0xff]
    %v311 = vld [vmem:[#allocation5 + $0x7d8] sm:$0xff]
    %v312 = vld [vmem:[#allocation5 + $0x7e0] sm:$0xff]
    %v313 = vld [vmem:[#allocation5 + $0x7e8] sm:$0xff]
    %v314 = vld [vmem:[#allocation5 + $0x7f0] sm:$0xff]
    %v315 = vld [vmem:[#allocation5 + $0x7f8] sm:$0xff]
    %v316 = vld [vmem:[#allocation7] sm:$0xff]
    %v318 = vperm.slane %v316, 0
    %v319 = vperm.slane %v316, 1
    %v320 = vperm.slane %v316, 2
    %v321 = vperm.slane %v316, 3
    %v322 = vperm.slane %v316, 4
    %v323 = vperm.slane %v316, 5
    %v324 = vperm.slane %v316, 6
    %v325 = vperm.slane %v316, 7
    %334 = vmatpush.msra.mxu0 %v180
    %335 = vmatpush.msra.mxu0 %v172
    %336 = vmatpush.msra.mxu0 %v164
    %337 = vmatpush.msra.mxu0 %v156
    %338 = vmatpush.msra.mxu0 %v148
    %339 = vmatpush.msra.mxu0 %v140
    %340 = vmatpush.msra.mxu0 %v132
    %341 = vmatpush.msra.mxu0 %v124
    %342 = vmatpush.msra.mxu0 %v116
    %343 = vmatpush.msra.mxu0 %v108
    %344 = vmatpush.msra.mxu0 %v100
    %345 = vmatpush.msra.mxu0 %v92
    %346 = vmatpush.msra.mxu0 %v84
    %347 = vmatpush.msra.mxu0 %v76
    %348 = vmatpush.msra.mxu0 %v68
    %349 = vmatpush.msra.mxu0 %v60
    %350 = vmatmul.f32.gmra.mxu0 %v58
    %v351 = vpop.f32.mrf.mxu0
    %v352 = vadd.f32 %v318, %v351
    %353 = vdwg.mxu0
    %354 = vmatpush.msra.mxu0 %v308
    %355 = vmatpush.msra.mxu0 %v300
    %356 = vmatpush.msra.mxu0 %v292
    %357 = vmatpush.msra.mxu0 %v284
    %358 = vmatpush.msra.mxu0 %v276
    %359 = vmatpush.msra.mxu0 %v268
    %360 = vmatpush.msra.mxu0 %v260
    %361 = vmatpush.msra.mxu0 %v252
    %362 = vmatpush.msra.mxu0 %v244
    %363 = vmatpush.msra.mxu0 %v236
    %364 = vmatpush.msra.mxu0 %v228
    %365 = vmatpush.msra.mxu0 %v220
    %366 = vmatpush.msra.mxu0 %v212
    %367 = vmatpush.msra.mxu0 %v204
    %368 = vmatpush.msra.mxu0 %v196
    %369 = vmatpush.msra.mxu0 %v188
    %370 = vmatmul.f32.gmra.mxu0 %v59
    %v371 = vpop.f32.mrf.mxu0
    %v372 = vadd.f32 %v352, %v371
    %373 = vdwg.mxu0
    %374 = vmatpush.msra.mxu0 %v181
    %375 = vmatpush.msra.mxu0 %v173
    %376 = vmatpush.msra.mxu0 %v165
    %377 = vmatpush.msra.mxu0 %v157
    %378 = vmatpush.msra.mxu0 %v149
    %379 = vmatpush.msra.mxu0 %v141
    %380 = vmatpush.msra.mxu0 %v133
    %381 = vmatpush.msra.mxu0 %v125
    %382 = vmatpush.msra.mxu0 %v117
    %383 = vmatpush.msra.mxu0 %v109
    %384 = vmatpush.msra.mxu0 %v101
    %385 = vmatpush.msra.mxu0 %v93
    %386 = vmatpush.msra.mxu0 %v85
    %387 = vmatpush.msra.mxu0 %v77
    %388 = vmatpush.msra.mxu0 %v69
    %389 = vmatpush.msra.mxu0 %v61
    %390 = vmatmul.f32.gmra.mxu0 %v58
    %v391 = vpop.f32.mrf.mxu0
    %v392 = vadd.f32 %v319, %v391
    %393 = vdwg.mxu0
    %394 = vmatpush.msra.mxu0 %v309
    %395 = vmatpush.msra.mxu0 %v301
    %396 = vmatpush.msra.mxu0 %v293
    %397 = vmatpush.msra.mxu0 %v285
    %398 = vmatpush.msra.mxu0 %v277
    %399 = vmatpush.msra.mxu0 %v269
    %400 = vmatpush.msra.mxu0 %v261
    %401 = vmatpush.msra.mxu0 %v253
    %402 = vmatpush.msra.mxu0 %v245
    %403 = vmatpush.msra.mxu0 %v237
    %404 = vmatpush.msra.mxu0 %v229
    %405 = vmatpush.msra.mxu0 %v221
    %406 = vmatpush.msra.mxu0 %v213
    %407 = vmatpush.msra.mxu0 %v205
    %408 = vmatpush.msra.mxu0 %v197
    %409 = vmatpush.msra.mxu0 %v189
    %410 = vmatmul.f32.gmra.mxu0 %v59
    %v411 = vpop.f32.mrf.mxu0
    %v412 = vadd.f32 %v392, %v411
    %413 = vdwg.mxu0
    %414 = vmatpush.msra.mxu0 %v182
    %415 = vmatpush.msra.mxu0 %v174
    %416 = vmatpush.msra.mxu0 %v166
    %417 = vmatpush.msra.mxu0 %v158
    %418 = vmatpush.msra.mxu0 %v150
    %419 = vmatpush.msra.mxu0 %v142
    %420 = vmatpush.msra.mxu0 %v134
    %421 = vmatpush.msra.mxu0 %v126
    %422 = vmatpush.msra.mxu0 %v118
    %423 = vmatpush.msra.mxu0 %v110
    %424 = vmatpush.msra.mxu0 %v102
    %425 = vmatpush.msra.mxu0 %v94
    %426 = vmatpush.msra.mxu0 %v86
    %427 = vmatpush.msra.mxu0 %v78
    %428 = vmatpush.msra.mxu0 %v70
    %429 = vmatpush.msra.mxu0 %v62
    %430 = vmatmul.f32.gmra.mxu0 %v58
    %v431 = vpop.f32.mrf.mxu0
    %v432 = vadd.f32 %v320, %v431
    %433 = vdwg.mxu0
    %434 = vmatpush.msra.mxu0 %v310
    %435 = vmatpush.msra.mxu0 %v302
    %436 = vmatpush.msra.mxu0 %v294
    %437 = vmatpush.msra.mxu0 %v286
    %438 = vmatpush.msra.mxu0 %v278
    %439 = vmatpush.msra.mxu0 %v270
    %440 = vmatpush.msra.mxu0 %v262
    %441 = vmatpush.msra.mxu0 %v254
    %442 = vmatpush.msra.mxu0 %v246
    %443 = vmatpush.msra.mxu0 %v238
    %444 = vmatpush.msra.mxu0 %v230
    %445 = vmatpush.msra.mxu0 %v222
    %446 = vmatpush.msra.mxu0 %v214
    %447 = vmatpush.msra.mxu0 %v206
    %448 = vmatpush.msra.mxu0 %v198
    %449 = vmatpush.msra.mxu0 %v190
    %450 = vmatmul.f32.gmra.mxu0 %v59
    %v451 = vpop.f32.mrf.mxu0
    %v452 = vadd.f32 %v432, %v451
    %453 = vdwg.mxu0
    %454 = vmatpush.msra.mxu0 %v183
    %455 = vmatpush.msra.mxu0 %v175
    %456 = vmatpush.msra.mxu0 %v167
    %457 = vmatpush.msra.mxu0 %v159
    %458 = vmatpush.msra.mxu0 %v151
    %459 = vmatpush.msra.mxu0 %v143
    %460 = vmatpush.msra.mxu0 %v135
    %461 = vmatpush.msra.mxu0 %v127
    %462 = vmatpush.msra.mxu0 %v119
    %463 = vmatpush.msra.mxu0 %v111
    %464 = vmatpush.msra.mxu0 %v103
    %465 = vmatpush.msra.mxu0 %v95
    %466 = vmatpush.msra.mxu0 %v87
    %467 = vmatpush.msra.mxu0 %v79
    %468 = vmatpush.msra.mxu0 %v71
    %469 = vmatpush.msra.mxu0 %v63
    %470 = vmatmul.f32.gmra.mxu0 %v58
    %v471 = vpop.f32.mrf.mxu0
    %v472 = vadd.f32 %v321, %v471
    %473 = vdwg.mxu0
    %474 = vmatpush.msra.mxu0 %v311
    %475 = vmatpush.msra.mxu0 %v303
    %476 = vmatpush.msra.mxu0 %v295
    %477 = vmatpush.msra.mxu0 %v287
    %478 = vmatpush.msra.mxu0 %v279
    %479 = vmatpush.msra.mxu0 %v271
    %480 = vmatpush.msra.mxu0 %v263
    %481 = vmatpush.msra.mxu0 %v255
    %482 = vmatpush.msra.mxu0 %v247
    %483 = vmatpush.msra.mxu0 %v239
    %484 = vmatpush.msra.mxu0 %v231
    %485 = vmatpush.msra.mxu0 %v223
    %486 = vmatpush.msra.mxu0 %v215
    %487 = vmatpush.msra.mxu0 %v207
    %488 = vmatpush.msra.mxu0 %v199
    %489 = vmatpush.msra.mxu0 %v191
    %490 = vmatmul.f32.gmra.mxu0 %v59
    %v491 = vpop.f32.mrf.mxu0
    %v492 = vadd.f32 %v472, %v491
    %493 = vdwg.mxu0
    %494 = vmatpush.msra.mxu0 %v184
    %495 = vmatpush.msra.mxu0 %v176
    %496 = vmatpush.msra.mxu0 %v168
    %497 = vmatpush.msra.mxu0 %v160
    %498 = vmatpush.msra.mxu0 %v152
    %499 = vmatpush.msra.mxu0 %v144
    %500 = vmatpush.msra.mxu0 %v136
    %501 = vmatpush.msra.mxu0 %v128
    %502 = vmatpush.msra.mxu0 %v120
    %503 = vmatpush.msra.mxu0 %v112
    %504 = vmatpush.msra.mxu0 %v104
    %505 = vmatpush.msra.mxu0 %v96
    %506 = vmatpush.msra.mxu0 %v88
    %507 = vmatpush.msra.mxu0 %v80
    %508 = vmatpush.msra.mxu0 %v72
    %509 = vmatpush.msra.mxu0 %v64
    %510 = vmatmul.f32.gmra.mxu0 %v58
    %v511 = vpop.f32.mrf.mxu0
    %v512 = vadd.f32 %v322, %v511
    %513 = vdwg.mxu0
    %514 = vmatpush.msra.mxu0 %v312
    %515 = vmatpush.msra.mxu0 %v304
    %516 = vmatpush.msra.mxu0 %v296
    %517 = vmatpush.msra.mxu0 %v288
    %518 = vmatpush.msra.mxu0 %v280
    %519 = vmatpush.msra.mxu0 %v272
    %520 = vmatpush.msra.mxu0 %v264
    %521 = vmatpush.msra.mxu0 %v256
    %522 = vmatpush.msra.mxu0 %v248
    %523 = vmatpush.msra.mxu0 %v240
    %524 = vmatpush.msra.mxu0 %v232
    %525 = vmatpush.msra.mxu0 %v224
    %526 = vmatpush.msra.mxu0 %v216
    %527 = vmatpush.msra.mxu0 %v208
    %528 = vmatpush.msra.mxu0 %v200
    %529 = vmatpush.msra.mxu0 %v192
    %530 = vmatmul.f32.gmra.mxu0 %v59
    %v531 = vpop.f32.mrf.mxu0
    %v532 = vadd.f32 %v512, %v531
    %533 = vdwg.mxu0
    %534 = vmatpush.msra.mxu0 %v185
    %535 = vmatpush.msra.mxu0 %v177
    %536 = vmatpush.msra.mxu0 %v169
    %537 = vmatpush.msra.mxu0 %v161
    %538 = vmatpush.msra.mxu0 %v153
    %539 = vmatpush.msra.mxu0 %v145
    %540 = vmatpush.msra.mxu0 %v137
    %541 = vmatpush.msra.mxu0 %v129
    %542 = vmatpush.msra.mxu0 %v121
    %543 = vmatpush.msra.mxu0 %v113
    %544 = vmatpush.msra.mxu0 %v105
    %545 = vmatpush.msra.mxu0 %v97
    %546 = vmatpush.msra.mxu0 %v89
    %547 = vmatpush.msra.mxu0 %v81
    %548 = vmatpush.msra.mxu0 %v73
    %549 = vmatpush.msra.mxu0 %v65
    %550 = vmatmul.f32.gmra.mxu0 %v58
    %v551 = vpop.f32.mrf.mxu0
    %v552 = vadd.f32 %v323, %v551
    %553 = vdwg.mxu0
    %554 = vmatpush.msra.mxu0 %v313
    %555 = vmatpush.msra.mxu0 %v305
    %556 = vmatpush.msra.mxu0 %v297
    %557 = vmatpush.msra.mxu0 %v289
    %558 = vmatpush.msra.mxu0 %v281
    %559 = vmatpush.msra.mxu0 %v273
    %560 = vmatpush.msra.mxu0 %v265
    %561 = vmatpush.msra.mxu0 %v257
    %562 = vmatpush.msra.mxu0 %v249
    %563 = vmatpush.msra.mxu0 %v241
    %564 = vmatpush.msra.mxu0 %v233
    %565 = vmatpush.msra.mxu0 %v225
    %566 = vmatpush.msra.mxu0 %v217
    %567 = vmatpush.msra.mxu0 %v209
    %568 = vmatpush.msra.mxu0 %v201
    %569 = vmatpush.msra.mxu0 %v193
    %570 = vmatmul.f32.gmra.mxu0 %v59
    %v571 = vpop.f32.mrf.mxu0
    %v572 = vadd.f32 %v552, %v571
    %573 = vdwg.mxu0
    %574 = vmatpush.msra.mxu0 %v186
    %575 = vmatpush.msra.mxu0 %v178
    %576 = vmatpush.msra.mxu0 %v170
    %577 = vmatpush.msra.mxu0 %v162
    %578 = vmatpush.msra.mxu0 %v154
    %579 = vmatpush.msra.mxu0 %v146
    %580 = vmatpush.msra.mxu0 %v138
    %581 = vmatpush.msra.mxu0 %v130
    %582 = vmatpush.msra.mxu0 %v122
    %583 = vmatpush.msra.mxu0 %v114
    %584 = vmatpush.msra.mxu0 %v106
    %585 = vmatpush.msra.mxu0 %v98
    %586 = vmatpush.msra.mxu0 %v90
    %587 = vmatpush.msra.mxu0 %v82
    %588 = vmatpush.msra.mxu0 %v74
    %589 = vmatpush.msra.mxu0 %v66
    %590 = vmatmul.f32.gmra.mxu0 %v58
    %v591 = vpop.f32.mrf.mxu0
    %v592 = vadd.f32 %v324, %v591
    %593 = vdwg.mxu0
    %594 = vmatpush.msra.mxu0 %v314
    %595 = vmatpush.msra.mxu0 %v306
    %596 = vmatpush.msra.mxu0 %v298
    %597 = vmatpush.msra.mxu0 %v290
    %598 = vmatpush.msra.mxu0 %v282
    %599 = vmatpush.msra.mxu0 %v274
    %600 = vmatpush.msra.mxu0 %v266
    %601 = vmatpush.msra.mxu0 %v258
    %602 = vmatpush.msra.mxu0 %v250
    %603 = vmatpush.msra.mxu0 %v242
    %604 = vmatpush.msra.mxu0 %v234
    %605 = vmatpush.msra.mxu0 %v226
    %606 = vmatpush.msra.mxu0 %v218
    %607 = vmatpush.msra.mxu0 %v210
    %608 = vmatpush.msra.mxu0 %v202
    %609 = vmatpush.msra.mxu0 %v194
    %610 = vmatmul.f32.gmra.mxu0 %v59
    %v611 = vpop.f32.mrf.mxu0
    %v612 = vadd.f32 %v592, %v611
    %613 = vdwg.mxu0
    %614 = vmatpush.msra.mxu0 %v187
    %615 = vmatpush.msra.mxu0 %v179
    %616 = vmatpush.msra.mxu0 %v171
    %617 = vmatpush.msra.mxu0 %v163
    %618 = vmatpush.msra.mxu0 %v155
    %619 = vmatpush.msra.mxu0 %v147
    %620 = vmatpush.msra.mxu0 %v139
    %621 = vmatpush.msra.mxu0 %v131
    %622 = vmatpush.msra.mxu0 %v123
    %623 = vmatpush.msra.mxu0 %v115
    %624 = vmatpush.msra.mxu0 %v107
    %625 = vmatpush.msra.mxu0 %v99
    %626 = vmatpush.msra.mxu0 %v91
    %627 = vmatpush.msra.mxu0 %v83
    %628 = vmatpush.msra.mxu0 %v75
    %629 = vmatpush.msra.mxu0 %v67
    %630 = vmatmul.f32.gmra.mxu0 %v58
    %v631 = vpop.f32.mrf.mxu0
    %v632 = vadd.f32 %v325, %v631
    %633 = vdwg.mxu0
    %634 = vmatpush.msra.mxu0 %v315
    %635 = vmatpush.msra.mxu0 %v307
    %636 = vmatpush.msra.mxu0 %v299
    %637 = vmatpush.msra.mxu0 %v291
    %638 = vmatpush.msra.mxu0 %v283
    %639 = vmatpush.msra.mxu0 %v275
    %640 = vmatpush.msra.mxu0 %v267
    %641 = vmatpush.msra.mxu0 %v259
    %642 = vmatpush.msra.mxu0 %v251
    %643 = vmatpush.msra.mxu0 %v243
    %644 = vmatpush.msra.mxu0 %v235
    %645 = vmatpush.msra.mxu0 %v227
    %646 = vmatpush.msra.mxu0 %v219
    %647 = vmatpush.msra.mxu0 %v211
    %648 = vmatpush.msra.mxu0 %v203
    %649 = vmatpush.msra.mxu0 %v195
    %650 = vmatmul.f32.gmra.mxu0 %v59
    %v651 = vpop.f32.mrf.mxu0
    %v652 = vadd.f32 %v632, %v651
    %653 = vdwg.mxu0
    %654 = vst [vmem:[#allocation8] sm:$0xff] %v372
    %655 = vst [vmem:[#allocation8 + $0x8] sm:$0xff] %v412
    %656 = vst [vmem:[#allocation8 + $0x10] sm:$0xff] %v452
    %657 = vst [vmem:[#allocation8 + $0x18] sm:$0xff] %v492
    %658 = vst [vmem:[#allocation8 + $0x20] sm:$0xff] %v532
    %659 = vst [vmem:[#allocation8 + $0x28] sm:$0xff] %v572
    %660 = vst [vmem:[#allocation8 + $0x30] sm:$0xff] %v612
    %661 = vst [vmem:[#allocation8 + $0x38] sm:$0xff] %v652
    // Predicated region
    $region26: #{_mapping_forward_impl.1} parent=1 // pred_check
      _
    $region27: #{_mapping_forward_impl.1} parent=1 // pred_check_branch
      %663 = sbr.rel (0) target = $region29
    $region28: #{_mapping_forward_impl.1} parent=1 // pred_region
      %665 = vsyncadd [#allocation4], 0
      %s667 = sshll.u32 [#allocation8], 4
      %s668 = int_to_ptr.vmem [resolvable:$true] %s667
      %s669 = sshll.u32 %s3, 4
      %s670 = int_to_ptr.hbm [resolvable:$true] %s669
      %672 = dma.vmem_to_hbm [thread:$0]  %s668, 1024, %s670, [#allocation4]
    $region29: #{_mapping_forward_impl.1} parent=1 // pred_fallthru
      _
    // Predicated region
    $region30: #{_mapping_forward_impl.1} parent=1 // pred_check
      _
    $region31: #{_mapping_forward_impl.1} parent=1 // pred_check_branch
      %674 = sbr.rel (0) target = $region33
    $region32: #{_mapping_forward_impl.1} parent=1 // pred_region
      %676 = dma.done [#allocation4], 1024
    $region33: #{_mapping_forward_impl.1} parent=1 // pred_fallthru
      _
    %677 = vsyncpa [#allocation3], 1
    %678 = vsyncpa [#allocation6], 1
    %679 = vsyncpa [#allocation4], 1

</llo_original>
